<compile_context>
chip_gen: v5e
topology: v5e:2x2
jax: 0.10.0
libtpu: 0.0.40
codegen_flags: <defaults>
</compile_context>

<pallas_src>
import functools
import math

import jax
import jax.numpy as jnp
from jax.experimental import pallas as pl
from jax.experimental.pallas import tpu as pltpu

WORN = 512                # FFT size used by iirnet signal.sosfreqz default
NFREQ = WORN // 2 + 1     # rfft bins = 257
FPAD = 384                # 257 padded up to a lane multiple (3 * 128)
NCOEF = 8                 # 6 SOS coefficients [b0,b1,b2,a0,a1,a2] zero-padded to 8
EPS = 1e-8
LOG_SCALE = 20.0 / math.log(10.0)   # 20*log10(x) == LOG_SCALE * ln(x)

# TODO(synk): reference upcasts SOS to float64 (sos.double()); TPU computes in float32
#             (and the MXU matmul may use reduced-precision passes).
# TODO(synk): priority=True branch (partial-cascade MSE accumulation) not implemented.
# TODO(synk): for very large section counts, switch the two f32 products to a log-sum
#             (or lax.fori_loop) to avoid overflow/underflow and vreg bloat.


def _make_basis():
    """(8, 4*FPAD) f32 basis: coeff row -> [num_re | num_im | den_re | den_im]."""
    k = jnp.arange(FPAD, dtype=jnp.float32)
    w = (2.0 * math.pi / float(WORN)) * k
    c1, s1 = jnp.cos(w), jnp.sin(w)
    c2, s2 = jnp.cos(2.0 * w), jnp.sin(2.0 * w)
    one = jnp.ones_like(w)
    zero = jnp.zeros_like(w)
    rows = [
        jnp.concatenate([one,  zero, zero, zero]),   # b0
        jnp.concatenate([c1,   -s1,  zero, zero]),   # b1
        jnp.concatenate([c2,   -s2,  zero, zero]),   # b2
        jnp.concatenate([zero, zero, one,  zero]),   # a0
        jnp.concatenate([zero, zero, c1,   -s1]),    # a1
        jnp.concatenate([zero, zero, c2,   -s2]),    # a2
        jnp.zeros((4 * FPAD,), jnp.float32),         # coeff pad
        jnp.zeros((4 * FPAD,), jnp.float32),         # coeff pad
    ]
    return jnp.stack(rows, axis=0)


def _loss_kernel(sos_ref, basis_ref, out_ref, *, n_sections, tile_b):
    # sos_ref  : (n_sections * 2 * tile_b, 8)  rows ordered (section, [input|target], batch)
    # basis_ref: (8, 4*FPAD), VMEM-resident across grid steps
    # out_ref  : (8, 128) lane-dense block; partial squared-diff sum lands at [0, 0]
    rps = 2 * tile_b                      # rows per section: input rows then target rows
    coeffs = sos_ref[...]

    # All numerator / denominator responses in two small MXU matmuls (no lane broadcasts).
    nmat = jnp.dot(coeffs, basis_ref[:, 0:2 * FPAD], preferred_element_type=jnp.float32)
    n_re = nmat[:, 0:FPAD]
    n_im = nmat[:, FPAD:2 * FPAD]
    num2 = n_re * n_re + n_im * n_im                                   # (rows, FPAD)

    dmat = jnp.dot(coeffs, basis_ref[:, 2 * FPAD:4 * FPAD], preferred_element_type=jnp.float32)
    d_re = dmat[:, 0:FPAD]
    d_im = dmat[:, FPAD:2 * FPAD]
    den2 = d_re * d_re + d_im * d_im                                   # (rows, FPAD)

    # Cascade |H|^2 = prod_s |num_s|^2 / prod_s |den_s|^2 : two products, ONE divide.
    p_num = num2[0:rps]
    p_den = den2[0:rps]
    for s in range(1, n_sections):        # static unroll; section counts are small
        lo = s * rps
        p_num = p_num * num2[lo:lo + rps]
        p_den = p_den * den2[lo:lo + rps]

    mag = jnp.sqrt(p_num / p_den)                                      # (2*tile_b, FPAD)
    log_mag = LOG_SCALE * jnp.log(mag + EPS)                           # 20*log10(mag + eps)

    diff = log_mag[0:tile_b] - log_mag[tile_b:rps]                     # (tile_b, FPAD)
    lane = jax.lax.broadcasted_iota(jnp.int32, diff.shape, 1)
    diff = jnp.where(lane < NFREQ, diff, 0.0)                          # drop pad lanes
    partial = jnp.sum(diff * diff)

    r = jax.lax.broadcasted_iota(jnp.int32, (8, 128), 0)
    c = jax.lax.broadcasted_iota(jnp.int32, (8, 128), 1)
    out_ref[...] = jnp.where((r == 0) & (c == 0), partial, 0.0)


def log_mag_frequency_loss(input_sos, target_sos):
    """priority=False path of LogMagFrequencyLoss.forward. Returns a scalar f32."""
    B, S, C = input_sos.shape
    assert C == 6 and target_sos.shape == (B, S, 6)

    tile_b = 8 if B <= 16 else 32                 # 8-32 batch rows per grid step
    b_pad = ((B + tile_b - 1) // tile_b) * tile_b
    num_tiles = b_pad // tile_b

    inp = input_sos.astype(jnp.float32)
    tgt = target_sos.astype(jnp.float32)
    if b_pad != B:
        # Identity biquads (b=[1,0,0], a=[1,0,0]) -> H == 1 for both input and target
        # pad rows, so their diff is exactly 0 and they add nothing to the loss.
        ident = jnp.zeros((b_pad - B, S, 6), jnp.float32)
        ident = ident.at[:, :, 0].set(1.0).at[:, :, 3].set(1.0)
        inp = jnp.concatenate([inp, ident], axis=0)
        tgt = jnp.concatenate([tgt, ident], axis=0)

    # Coefficient axis 6 -> 8 (matching zero rows of the basis), then lay rows out as
    # (tile, section-major, [input rows | target rows], batch-within-tile, coeff).
    stacked = jnp.stack([inp, tgt], axis=0)                           # (2, b_pad, S, 6)
    stacked = jnp.pad(stacked, ((0, 0), (0, 0), (0, 0), (0, NCOEF - 6)))
    arr = jnp.transpose(stacked, (2, 0, 1, 3))                        # (S, 2, b_pad, 8)
    arr = arr.reshape(S, 2, num_tiles, tile_b, NCOEF)
    arr = jnp.transpose(arr, (2, 0, 1, 3, 4))                         # (tiles, S, 2, tb, 8)
    sos_tiles = arr.reshape(num_tiles, S * 2 * tile_b, NCOEF)

    basis = _make_basis()
    rows = S * 2 * tile_b

    kernel = functools.partial(_loss_kernel, n_sections=S, tile_b=tile_b)
    partials = pl.pallas_call(
        kernel,
        out_shape=jax.ShapeDtypeStruct((num_tiles * 8, 128), jnp.float32),
        grid=(num_tiles,),
        in_specs=[
            pl.BlockSpec((None, rows, NCOEF), lambda i: (i, 0, 0)),   # per-tile SOS rows
            pl.BlockSpec((NCOEF, 4 * FPAD), lambda i: (0, 0)),        # resident cos/sin basis
        ],
        out_specs=pl.BlockSpec((8, 128), lambda i: (i, 0)),           # per-tile partial sum
        compiler_params=pltpu.CompilerParams(
            dimension_semantics=("parallel",),       # batch tiles are independent
            vmem_limit_bytes=32 * 1024 * 1024,       # safe on v5e/v6e (128 MiB) and v7x (64 MiB)
        ),
    )(sos_tiles, basis)

    # Final tiny reduction + mean over the true (batch, freq) element count.
    return jnp.sum(partials) / jnp.float32(B * NFREQ)


if __name__ == "__main__":
    key = jax.random.PRNGKey(0)
    k1, k2, k3, k4 = jax.random.split(key, 4)
    BATCH, N_SECTIONS = 2, 4

    def make_sos(kb, ka):
        # Numerators: small random; denominators: a0 = 1, small a1/a2 -> stable sections
        # (keeps the log-magnitude finite for the demo inputs).
        b = 0.5 * jax.random.normal(kb, (BATCH, N_SECTIONS, 3), jnp.float32)
        a12 = 0.3 * jax.random.uniform(
            ka, (BATCH, N_SECTIONS, 2), jnp.float32, minval=-1.0, maxval=1.0
        )
        a0 = jnp.ones((BATCH, N_SECTIONS, 1), jnp.float32)
        return jnp.concatenate([b, a0, a12], axis=-1)

    input_sos = make_sos(k1, k2)
    target_sos = make_sos(k3, k4)

    loss = log_mag_frequency_loss(input_sos, target_sos)
    jax.block_until_ready(loss)
    assert bool(jnp.isfinite(loss)), "loss is not finite"
    print("KERNEL_OK")
</pallas_src>

<mosaic_0001>
module attributes {stable_mosaic.version = 11 : i64} {
  func.func @_loss_kernel(%arg0: i32, %arg1: memref<1x64x8xf32, #tpu.memory_space<vmem>>, %arg2: memref<8x1536xf32, #tpu.memory_space<vmem>>, %arg3: memref<8x128xf32, #tpu.memory_space<vmem>>) attributes {dimension_semantics = [#tpu.dimension_semantics<parallel>], iteration_bounds = array<i64: 1>, scalar_prefetch = 0 : i64, scratch_operands = 0 : i64, tpu.core_type = #tpu.core_type<tc>, window_params = [{transform_indices = @transform_0, window_bounds = array<i64: 1, 64, 8>}, {pipeline_mode = #tpu.pipeline_mode<synchronous>, transform_indices = @transform_1, window_bounds = array<i64: 8, 1536>}, {transform_indices = @transform_2, window_bounds = array<i64: 8, 128>}]} {
    %c0 = arith.constant 0 : index
    %c0_0 = arith.constant 0 : index
    %c0_1 = arith.constant 0 : index
    %0 = vector.load %arg1[%c0, %c0_0, %c0_1] : memref<1x64x8xf32, #tpu.memory_space<vmem>>, vector<1x64x8xf32>
    %1 = vector.shape_cast %0 : vector<1x64x8xf32> to vector<64x8xf32>
    %c0_2 = arith.constant 0 : index
    %c0_3 = arith.constant 0 : index
    %2 = vector.load %arg2[%c0_2, %c0_3] : memref<8x1536xf32, #tpu.memory_space<vmem>>, vector<8x768xf32>
    %cst = arith.constant dense<0.000000e+00> : vector<64x768xf32>
    %3 = tpu.matmul %1, %2, %cst {dimension_numbers = #tpu.dot_dimension_numbers<[1], [0], [0], [1], [0, 0, 1, 1], [], []>} : vector<64x8xf32>, vector<8x768xf32>, vector<64x768xf32> -> vector<64x768xf32>
    %4 = vector.extract_strided_slice %3 {offsets = [0, 0], sizes = [64, 384], strides = [1, 1]} : vector<64x768xf32> to vector<64x384xf32>
    %5 = vector.extract_strided_slice %3 {offsets = [0, 384], sizes = [64, 384], strides = [1, 1]} : vector<64x768xf32> to vector<64x384xf32>
    %6 = arith.mulf %4, %4 : vector<64x384xf32>
    %7 = arith.mulf %5, %5 : vector<64x384xf32>
    %8 = arith.addf %6, %7 : vector<64x384xf32>
    %c0_4 = arith.constant 0 : index
    %c768 = arith.constant 768 : index
    %9 = vector.load %arg2[%c0_4, %c768] : memref<8x1536xf32, #tpu.memory_space<vmem>>, vector<8x768xf32>
    %cst_5 = arith.constant dense<0.000000e+00> : vector<64x768xf32>
    %10 = tpu.matmul %1, %9, %cst_5 {dimension_numbers = #tpu.dot_dimension_numbers<[1], [0], [0], [1], [0, 0, 1, 1], [], []>} : vector<64x8xf32>, vector<8x768xf32>, vector<64x768xf32> -> vector<64x768xf32>
    %11 = vector.extract_strided_slice %10 {offsets = [0, 0], sizes = [64, 384], strides = [1, 1]} : vector<64x768xf32> to vector<64x384xf32>
    %12 = vector.extract_strided_slice %10 {offsets = [0, 384], sizes = [64, 384], strides = [1, 1]} : vector<64x768xf32> to vector<64x384xf32>
    %13 = arith.mulf %11, %11 : vector<64x384xf32>
    %14 = arith.mulf %12, %12 : vector<64x384xf32>
    %15 = arith.addf %13, %14 : vector<64x384xf32>
    %16 = vector.extract_strided_slice %8 {offsets = [0, 0], sizes = [16, 384], strides = [1, 1]} : vector<64x384xf32> to vector<16x384xf32>
    %17 = vector.extract_strided_slice %15 {offsets = [0, 0], sizes = [16, 384], strides = [1, 1]} : vector<64x384xf32> to vector<16x384xf32>
    %18 = vector.extract_strided_slice %8 {offsets = [16, 0], sizes = [16, 384], strides = [1, 1]} : vector<64x384xf32> to vector<16x384xf32>
    %19 = arith.mulf %16, %18 : vector<16x384xf32>
    %20 = vector.extract_strided_slice %15 {offsets = [16, 0], sizes = [16, 384], strides = [1, 1]} : vector<64x384xf32> to vector<16x384xf32>
    %21 = arith.mulf %17, %20 : vector<16x384xf32>
    %22 = vector.extract_strided_slice %8 {offsets = [32, 0], sizes = [16, 384], strides = [1, 1]} : vector<64x384xf32> to vector<16x384xf32>
    %23 = arith.mulf %19, %22 : vector<16x384xf32>
    %24 = vector.extract_strided_slice %15 {offsets = [32, 0], sizes = [16, 384], strides = [1, 1]} : vector<64x384xf32> to vector<16x384xf32>
    %25 = arith.mulf %21, %24 : vector<16x384xf32>
    %26 = vector.extract_strided_slice %8 {offsets = [48, 0], sizes = [16, 384], strides = [1, 1]} : vector<64x384xf32> to vector<16x384xf32>
    %27 = arith.mulf %23, %26 : vector<16x384xf32>
    %28 = vector.extract_strided_slice %15 {offsets = [48, 0], sizes = [16, 384], strides = [1, 1]} : vector<64x384xf32> to vector<16x384xf32>
    %29 = arith.mulf %25, %28 : vector<16x384xf32>
    %30 = arith.divf %27, %29 : vector<16x384xf32>
    %31 = math.sqrt %30 : vector<16x384xf32>
    %cst_6 = arith.constant 9.99999993E-9 : f32
    %32 = vector.broadcast %cst_6 : f32 to vector<16x384xf32>
    %33 = arith.addf %31, %32 : vector<16x384xf32>
    %34 = math.log %33 : vector<16x384xf32>
    %cst_7 = arith.constant 8.68588924 : f32
    %35 = vector.broadcast %cst_7 : f32 to vector<16x384xf32>
    %36 = arith.mulf %35, %34 : vector<16x384xf32>
    %37 = vector.extract_strided_slice %36 {offsets = [0, 0], sizes = [8, 384], strides = [1, 1]} : vector<16x384xf32> to vector<8x384xf32>
    %38 = vector.extract_strided_slice %36 {offsets = [8, 0], sizes = [8, 384], strides = [1, 1]} : vector<16x384xf32> to vector<8x384xf32>
    %39 = arith.subf %37, %38 : vector<8x384xf32>
    %40 = tpu.iota {dimensions = array<i32: 1>} : vector<8x384xi32>
    %c257_i32 = arith.constant 257 : i32
    %41 = vector.broadcast %c257_i32 : i32 to vector<8x384xi32>
    %42 = arith.cmpi slt, %40, %41 : vector<8x384xi32>
    %cst_8 = arith.constant 0.000000e+00 : f32
    %43 = vector.broadcast %cst_8 : f32 to vector<8x384xf32>
    %44 = arith.select %42, %39, %43 : vector<8x384xi1>, vector<8x384xf32>
    %45 = arith.mulf %44, %44 : vector<8x384xf32>
    %46 = vector.shape_cast %45 : vector<8x384xf32> to vector<1x8x384xf32>
    %cst_9 = arith.constant dense<0.000000e+00> : vector<1xf32>
    %47 = vector.multi_reduction <add>, %46, %cst_9 [1, 2] : vector<1x8x384xf32> to vector<1xf32>
    %48 = vector.shape_cast %47 : vector<1xf32> to vector<1x1x1xf32>
    %49 = vector.extract %48[0, 0, 0] : f32 from vector<1x1x1xf32>
    %50 = tpu.iota {dimensions = array<i32: 0>} : vector<8x128xi32>
    %51 = tpu.iota {dimensions = array<i32: 1>} : vector<8x128xi32>
    %c0_i32 = arith.constant 0 : i32
    %52 = vector.broadcast %c0_i32 : i32 to vector<8x128xi32>
    %53 = arith.cmpi eq, %50, %52 : vector<8x128xi32>
    %c0_i32_10 = arith.constant 0 : i32
    %54 = vector.broadcast %c0_i32_10 : i32 to vector<8x128xi32>
    %55 = arith.cmpi eq, %51, %54 : vector<8x128xi32>
    %56 = arith.andi %53, %55 : vector<8x128xi1>
    %cst_11 = arith.constant 0.000000e+00 : f32
    %57 = vector.broadcast %49 : f32 to vector<8x128xf32>
    %58 = vector.broadcast %cst_11 : f32 to vector<8x128xf32>
    %59 = arith.select %56, %57, %58 : vector<8x128xi1>, vector<8x128xf32>
    %c0_12 = arith.constant 0 : index
    %c0_13 = arith.constant 0 : index
    %60 = vector.load %arg3[%c0_12, %c0_13] : memref<8x128xf32, #tpu.memory_space<vmem>>, vector<8x128xf32>
    tpu.vector_store %arg3[%c0_12, %c0_13], %59 {strides = array<i32>} : memref<8x128xf32, #tpu.memory_space<vmem>>, vector<8x128xf32>,
    return
  }
  func.func @transform_0(%arg0: i32) -> (i32, i32, i32) {
    %c0_i32 = arith.constant 0 : i32
    %c0_i32_0 = arith.constant 0 : i32
    %c0_i32_1 = arith.constant 0 : i32
    return %arg0, %c0_i32, %c0_i32_0 : i32, i32, i32
  }
  func.func @transform_1(%arg0: i32) -> (i32, i32) {
    %c0_i32 = arith.constant 0 : i32
    %c0_i32_0 = arith.constant 0 : i32
    %c0_i32_1 = arith.constant 0 : i32
    return %c0_i32, %c0_i32_0 : i32, i32
  }
  func.func @transform_2(%arg0: i32) -> (i32, i32) {
    %c0_i32 = arith.constant 0 : i32
    %c0_i32_0 = arith.constant 0 : i32
    return %arg0, %c0_i32 : i32, i32
  }
}

</mosaic_0001>

<llo_original>
// kernel: tpu_custom_call.1
$region0: #{tpu_custom_call.1}
  #allocation0 [shape = 'u32[]', space=smem, size = 0x4, offset = 0x4, fixed_abs, tag = 'smem constant byte address 0x4 - core index']
  #allocation1 [shape = 'u32[72,128]{1,0:T(1,128)}', space=vmem, size = 0x9000, scoped, tag = 'internal scratch']
  %s0 = inlined_call_operand.vmem [shape: f32[1,64,8], index: 0, kind: input, shape index: {}]
  %s1 = inlined_call_operand.hbm [shape: f32[8,1536], index: 1, kind: input, shape index: {}]
  %s2 = inlined_call_operand.hbm [shape: f32[8,128], index: 2, kind: output, shape index: {}]
  %s3 = sld [smem:[#allocation0]]
  $region22: #{tpu_custom_call.1} parent=0
    _
  %s5 = ssub.s32 1, %s3
  %s6 = scalar_select 0, %s5, %s3
  $region1: #{tpu_custom_call.1} parent=0
    #allocation2 [shape = 'u8[49152]{0}', space=vmem, size = 0xc000, scoped, tag = 'input window, operand 1, single buffered']
    #allocation3 [shape = 's32[1]{0}', space=sflag, size = 0x4, scoped, tag = 'scoped memory for tpu_custom_call.1']
    #allocation4 [shape = 's32[1]{0}', space=sflag, size = 0x4, scoped, tag = 'scoped memory for tpu_custom_call.1']
    #allocation5 [shape = 'u8[4096]{0}', space=vmem, size = 0x1000, scoped, tag = 'output window, operand 0, single buffered']
    %7 = vsyncpa [#allocation3], 0
    %8 = vsyncpa [#allocation4], 0
    // Predicated region
    $region2: #{tpu_custom_call.1} parent=1 // pred_check
      _
    $region3: #{tpu_custom_call.1} parent=1 // pred_check_branch
      %10 = sbr.rel (0) target = $region5
    $region4: #{tpu_custom_call.1} parent=1 // pred_region
      _
    $region5: #{tpu_custom_call.1} parent=1 // pred_fallthru
      _
    // Predicated region
    $region6: #{tpu_custom_call.1} parent=1 // pred_check
      _
    $region7: #{tpu_custom_call.1} parent=1 // pred_check_branch
      %12 = sbr.rel (0) target = $region9
    $region8: #{tpu_custom_call.1} parent=1 // pred_region
      %14 = vsyncadd [#allocation3], 0
      %s16 = sshll.u32 %s1, 4
      %s17 = int_to_ptr.hbm [resolvable:$true] %s16
      %s18 = sshll.u32 [#allocation2], 4
      %s19 = int_to_ptr.vmem [resolvable:$true] %s18
      %21 = dma.hbm_to_vmem [thread:$0]  %s17, 1536, %s19, [#allocation3]
    $region9: #{tpu_custom_call.1} parent=1 // pred_fallthru
      _
    // Predicated region
    $region10: #{tpu_custom_call.1} parent=1 // pred_check
      _
    $region11: #{tpu_custom_call.1} parent=1 // pred_check_branch
      %23 = sbr.rel (0) target = $region13
    $region12: #{tpu_custom_call.1} parent=1 // pred_region
      %25 = dma.done [#allocation3], 1536
    $region13: #{tpu_custom_call.1} parent=1 // pred_fallthru
      _
    %v26 = vld [vmem:[%s0] sm:$0xff]
    %v27 = vld [vmem:[%s0 + $0x8] sm:$0xff]
    %v28 = vld [vmem:[%s0 + $0x10] sm:$0xff]
    %v29 = vld [vmem:[%s0 + $0x18] sm:$0xff]
    %v30 = vld [vmem:[%s0 + $0x20] sm:$0xff]
    %v31 = vld [vmem:[%s0 + $0x28] sm:$0xff]
    %v32 = vld [vmem:[%s0 + $0x30] sm:$0xff]
    %v33 = vld [vmem:[%s0 + $0x38] sm:$0xff]
    %v34 = vld [vmem:[#allocation2] sm:$0xff]
    %v35 = vld [vmem:[#allocation2 + $0x8] sm:$0xff]
    %v36 = vld [vmem:[#allocation2 + $0x10] sm:$0xff]
    %v37 = vld [vmem:[#allocation2 + $0x18] sm:$0xff]
    %v38 = vld [vmem:[#allocation2 + $0x20] sm:$0xff]
    %v39 = vld [vmem:[#allocation2 + $0x28] sm:$0xff]
    %vm40 = vcmask 64512
    %v42 = vsel %vm40, %v26, 0
    %v45 = vsel %vm40, %v27, 0
    %v48 = vsel %vm40, %v28, 0
    %v51 = vsel %vm40, %v29, 0
    %v54 = vsel %vm40, %v30, 0
    %v57 = vsel %vm40, %v31, 0
    %v60 = vsel %vm40, %v32, 0
    %v63 = vsel %vm40, %v33, 0
    %65 = vmatpush.msra.mxu0 0.0
    %66 = vmatpush.msra.mxu0 0.0
    %67 = vmatpush.msra.mxu0 0.0
    %68 = vmatpush.msra.mxu0 0.0
    %69 = vmatpush.msra.mxu0 0.0
    %70 = vmatpush.msra.mxu0 0.0
    %71 = vmatpush.msra.mxu0 0.0
    %72 = vmatpush.msra.mxu0 0.0
    %73 = vmatpush.msra.mxu0 0.0
    %74 = vmatpush.msra.mxu0 0.0
    %75 = vmatpush.msra.mxu0 0.0
    %76 = vmatpush.msra.mxu0 0.0
    %77 = vmatpush.msra.mxu0 0.0
    %78 = vmatpush.msra.mxu0 0.0
    %79 = vmatpush.msra.mxu0 0.0
    %80 = vmatpush.msra.mxu0 %v34
    %81 = vmatmul.f32.gmra.mxu0 %v42
    %v82 = vpop.f32.mrf.mxu0
    %v83 = vadd.f32 0.0, %v82
    %84 = vmatmul.f32.gmra.mxu0 %v45
    %v85 = vpop.f32.mrf.mxu0
    %v86 = vadd.f32 0.0, %v85
    %87 = vmatmul.f32.gmra.mxu0 %v48
    %v88 = vpop.f32.mrf.mxu0
    %v89 = vadd.f32 0.0, %v88
    %90 = vmatmul.f32.gmra.mxu0 %v51
    %v91 = vpop.f32.mrf.mxu0
    %v92 = vadd.f32 0.0, %v91
    %93 = vmatmul.f32.gmra.mxu0 %v54
    %v94 = vpop.f32.mrf.mxu0
    %v95 = vadd.f32 0.0, %v94
    %96 = vmatmul.f32.gmra.mxu0 %v57
    %v97 = vpop.f32.mrf.mxu0
    %v98 = vadd.f32 0.0, %v97
    %99 = vmatmul.f32.gmra.mxu0 %v60
    %v100 = vpop.f32.mrf.mxu0
    %v101 = vadd.f32 0.0, %v100
    %102 = vmatmul.f32.gmra.mxu0 %v63
    %v103 = vpop.f32.mrf.mxu0
    %v104 = vadd.f32 0.0, %v103
    %105 = vdwg.mxu0
    %106 = vmatpush.msra.mxu0 0.0
    %107 = vmatpush.msra.mxu0 0.0
    %108 = vmatpush.msra.mxu0 0.0
    %109 = vmatpush.msra.mxu0 0.0
    %110 = vmatpush.msra.mxu0 0.0
    %111 = vmatpush.msra.mxu0 0.0
    %112 = vmatpush.msra.mxu0 0.0
    %113 = vmatpush.msra.mxu0 0.0
    %114 = vmatpush.msra.mxu0 0.0
    %115 = vmatpush.msra.mxu0 0.0
    %116 = vmatpush.msra.mxu0 0.0
    %117 = vmatpush.msra.mxu0 0.0
    %118 = vmatpush.msra.mxu0 0.0
    %119 = vmatpush.msra.mxu0 0.0
    %120 = vmatpush.msra.mxu0 0.0
    %121 = vmatpush.msra.mxu0 %v35
    %122 = vmatmul.f32.gmra.mxu0 %v42
    %v123 = vpop.f32.mrf.mxu0
    %v124 = vadd.f32 0.0, %v123
    %125 = vmatmul.f32.gmra.mxu0 %v45
    %v126 = vpop.f32.mrf.mxu0
    %v127 = vadd.f32 0.0, %v126
    %128 = vmatmul.f32.gmra.mxu0 %v48
    %v129 = vpop.f32.mrf.mxu0
    %v130 = vadd.f32 0.0, %v129
    %131 = vmatmul.f32.gmra.mxu0 %v51
    %v132 = vpop.f32.mrf.mxu0
    %v133 = vadd.f32 0.0, %v132
    %134 = vmatmul.f32.gmra.mxu0 %v54
    %v135 = vpop.f32.mrf.mxu0
    %v136 = vadd.f32 0.0, %v135
    %137 = vmatmul.f32.gmra.mxu0 %v57
    %v138 = vpop.f32.mrf.mxu0
    %v139 = vadd.f32 0.0, %v138
    %140 = vmatmul.f32.gmra.mxu0 %v60
    %v141 = vpop.f32.mrf.mxu0
    %v142 = vadd.f32 0.0, %v141
    %143 = vmatmul.f32.gmra.mxu0 %v63
    %v144 = vpop.f32.mrf.mxu0
    %v145 = vadd.f32 0.0, %v144
    %146 = vdwg.mxu0
    %147 = vmatpush.msra.mxu0 0.0
    %148 = vmatpush.msra.mxu0 0.0
    %149 = vmatpush.msra.mxu0 0.0
    %150 = vmatpush.msra.mxu0 0.0
    %151 = vmatpush.msra.mxu0 0.0
    %152 = vmatpush.msra.mxu0 0.0
    %153 = vmatpush.msra.mxu0 0.0
    %154 = vmatpush.msra.mxu0 0.0
    %155 = vmatpush.msra.mxu0 0.0
    %156 = vmatpush.msra.mxu0 0.0
    %157 = vmatpush.msra.mxu0 0.0
    %158 = vmatpush.msra.mxu0 0.0
    %159 = vmatpush.msra.mxu0 0.0
    %160 = vmatpush.msra.mxu0 0.0
    %161 = vmatpush.msra.mxu0 0.0
    %162 = vmatpush.msra.mxu0 %v36
    %163 = vmatmul.f32.gmra.mxu0 %v42
    %v164 = vpop.f32.mrf.mxu0
    %v165 = vadd.f32 0.0, %v164
    %166 = vmatmul.f32.gmra.mxu0 %v45
    %v167 = vpop.f32.mrf.mxu0
    %v168 = vadd.f32 0.0, %v167
    %169 = vmatmul.f32.gmra.mxu0 %v48
    %v170 = vpop.f32.mrf.mxu0
    %v171 = vadd.f32 0.0, %v170
    %172 = vmatmul.f32.gmra.mxu0 %v51
    %v173 = vpop.f32.mrf.mxu0
    %v174 = vadd.f32 0.0, %v173
    %175 = vmatmul.f32.gmra.mxu0 %v54
    %v176 = vpop.f32.mrf.mxu0
    %v177 = vadd.f32 0.0, %v176
    %178 = vmatmul.f32.gmra.mxu0 %v57
    %v179 = vpop.f32.mrf.mxu0
    %v180 = vadd.f32 0.0, %v179
    %181 = vmatmul.f32.gmra.mxu0 %v60
    %v182 = vpop.f32.mrf.mxu0
    %v183 = vadd.f32 0.0, %v182
    %184 = vmatmul.f32.gmra.mxu0 %v63
    %v185 = vpop.f32.mrf.mxu0
    %v186 = vadd.f32 0.0, %v185
    %187 = vdwg.mxu0
    %188 = vmatpush.msra.mxu0 0.0
    %189 = vmatpush.msra.mxu0 0.0
    %190 = vmatpush.msra.mxu0 0.0
    %191 = vmatpush.msra.mxu0 0.0
    %192 = vmatpush.msra.mxu0 0.0
    %193 = vmatpush.msra.mxu0 0.0
    %194 = vmatpush.msra.mxu0 0.0
    %195 = vmatpush.msra.mxu0 0.0
    %196 = vmatpush.msra.mxu0 0.0
    %197 = vmatpush.msra.mxu0 0.0
    %198 = vmatpush.msra.mxu0 0.0
    %199 = vmatpush.msra.mxu0 0.0
    %200 = vmatpush.msra.mxu0 0.0
    %201 = vmatpush.msra.mxu0 0.0
    %202 = vmatpush.msra.mxu0 0.0
    %203 = vmatpush.msra.mxu0 %v37
    %204 = vmatmul.f32.gmra.mxu0 %v42
    %v205 = vpop.f32.mrf.mxu0
    %v206 = vadd.f32 0.0, %v205
    %207 = vmatmul.f32.gmra.mxu0 %v45
    %v208 = vpop.f32.mrf.mxu0
    %v209 = vadd.f32 0.0, %v208
    %210 = vmatmul.f32.gmra.mxu0 %v48
    %v211 = vpop.f32.mrf.mxu0
    %v212 = vadd.f32 0.0, %v211
    %213 = vmatmul.f32.gmra.mxu0 %v51
    %v214 = vpop.f32.mrf.mxu0
    %v215 = vadd.f32 0.0, %v214
    %216 = vmatmul.f32.gmra.mxu0 %v54
    %v217 = vpop.f32.mrf.mxu0
    %v218 = vadd.f32 0.0, %v217
    %219 = vmatmul.f32.gmra.mxu0 %v57
    %v220 = vpop.f32.mrf.mxu0
    %v221 = vadd.f32 0.0, %v220
    %222 = vmatmul.f32.gmra.mxu0 %v60
    %v223 = vpop.f32.mrf.mxu0
    %v224 = vadd.f32 0.0, %v223
    %225 = vmatmul.f32.gmra.mxu0 %v63
    %v226 = vpop.f32.mrf.mxu0
    %v227 = vadd.f32 0.0, %v226
    %228 = vdwg.mxu0
    %229 = vmatpush.msra.mxu0 0.0
    %230 = vmatpush.msra.mxu0 0.0
    %231 = vmatpush.msra.mxu0 0.0
    %232 = vmatpush.msra.mxu0 0.0
    %233 = vmatpush.msra.mxu0 0.0
    %234 = vmatpush.msra.mxu0 0.0
    %235 = vmatpush.msra.mxu0 0.0
    %236 = vmatpush.msra.mxu0 0.0
    %237 = vmatpush.msra.mxu0 0.0
    %238 = vmatpush.msra.mxu0 0.0
    %239 = vmatpush.msra.mxu0 0.0
    %240 = vmatpush.msra.mxu0 0.0
    %241 = vmatpush.msra.mxu0 0.0
    %242 = vmatpush.msra.mxu0 0.0
    %243 = vmatpush.msra.mxu0 0.0
    %244 = vmatpush.msra.mxu0 %v38
    %245 = vmatmul.f32.gmra.mxu0 %v42
    %v246 = vpop.f32.mrf.mxu0
    %v247 = vadd.f32 0.0, %v246
    %248 = vmatmul.f32.gmra.mxu0 %v45
    %v249 = vpop.f32.mrf.mxu0
    %v250 = vadd.f32 0.0, %v249
    %251 = vmatmul.f32.gmra.mxu0 %v48
    %v252 = vpop.f32.mrf.mxu0
    %v253 = vadd.f32 0.0, %v252
    %254 = vmatmul.f32.gmra.mxu0 %v51
    %v255 = vpop.f32.mrf.mxu0
    %v256 = vadd.f32 0.0, %v255
    %257 = vmatmul.f32.gmra.mxu0 %v54
    %v258 = vpop.f32.mrf.mxu0
    %v259 = vadd.f32 0.0, %v258
    %260 = vmatmul.f32.gmra.mxu0 %v57
    %v261 = vpop.f32.mrf.mxu0
    %v262 = vadd.f32 0.0, %v261
    %263 = vmatmul.f32.gmra.mxu0 %v60
    %v264 = vpop.f32.mrf.mxu0
    %v265 = vadd.f32 0.0, %v264
    %266 = vmatmul.f32.gmra.mxu0 %v63
    %v267 = vpop.f32.mrf.mxu0
    %v268 = vadd.f32 0.0, %v267
    %269 = vdwg.mxu0
    %270 = vmatpush.msra.mxu0 0.0
    %271 = vmatpush.msra.mxu0 0.0
    %272 = vmatpush.msra.mxu0 0.0
    %273 = vmatpush.msra.mxu0 0.0
    %274 = vmatpush.msra.mxu0 0.0
    %275 = vmatpush.msra.mxu0 0.0
    %276 = vmatpush.msra.mxu0 0.0
    %277 = vmatpush.msra.mxu0 0.0
    %278 = vmatpush.msra.mxu0 0.0
    %279 = vmatpush.msra.mxu0 0.0
    %280 = vmatpush.msra.mxu0 0.0
    %281 = vmatpush.msra.mxu0 0.0
    %282 = vmatpush.msra.mxu0 0.0
    %283 = vmatpush.msra.mxu0 0.0
    %284 = vmatpush.msra.mxu0 0.0
    %285 = vmatpush.msra.mxu0 %v39
    %286 = vmatmul.f32.gmra.mxu0 %v42
    %v287 = vpop.f32.mrf.mxu0
    %v288 = vadd.f32 0.0, %v287
    %289 = vmatmul.f32.gmra.mxu0 %v45
    %v290 = vpop.f32.mrf.mxu0
    %v291 = vadd.f32 0.0, %v290
    %292 = vmatmul.f32.gmra.mxu0 %v48
    %v293 = vpop.f32.mrf.mxu0
    %v294 = vadd.f32 0.0, %v293
    %295 = vmatmul.f32.gmra.mxu0 %v51
    %v296 = vpop.f32.mrf.mxu0
    %v297 = vadd.f32 0.0, %v296
    %298 = vmatmul.f32.gmra.mxu0 %v54
    %v299 = vpop.f32.mrf.mxu0
    %v300 = vadd.f32 0.0, %v299
    %301 = vmatmul.f32.gmra.mxu0 %v57
    %v302 = vpop.f32.mrf.mxu0
    %v303 = vadd.f32 0.0, %v302
    %304 = vmatmul.f32.gmra.mxu0 %v60
    %v305 = vpop.f32.mrf.mxu0
    %v306 = vadd.f32 0.0, %v305
    %307 = vmatmul.f32.gmra.mxu0 %v63
    %v308 = vpop.f32.mrf.mxu0
    %v309 = vadd.f32 0.0, %v308
    %310 = vdwg.mxu0
    %v311 = vmul.f32 %v83, %v83
    %v312 = vmul.f32 %v124, %v124
    %v313 = vmul.f32 %v165, %v165
    %v314 = vmul.f32 %v86, %v86
    %v315 = vmul.f32 %v127, %v127
    %v316 = vmul.f32 %v168, %v168
    %v317 = vmul.f32 %v89, %v89
    %v318 = vmul.f32 %v130, %v130
    %v319 = vmul.f32 %v171, %v171
    %v320 = vmul.f32 %v92, %v92
    %v321 = vmul.f32 %v133, %v133
    %v322 = vmul.f32 %v174, %v174
    %v323 = vmul.f32 %v95, %v95
    %v324 = vmul.f32 %v136, %v136
    %v325 = vmul.f32 %v177, %v177
    %v326 = vmul.f32 %v98, %v98
    %v327 = vmul.f32 %v139, %v139
    %v328 = vmul.f32 %v180, %v180
    %v329 = vmul.f32 %v101, %v101
    %v330 = vmul.f32 %v142, %v142
    %v331 = vmul.f32 %v183, %v183
    %v332 = vmul.f32 %v104, %v104
    %v333 = vmul.f32 %v145, %v145
    %v334 = vmul.f32 %v186, %v186
    %v335 = vmul.f32 %v206, %v206
    %v336 = vmul.f32 %v247, %v247
    %v337 = vmul.f32 %v288, %v288
    %v338 = vmul.f32 %v209, %v209
    %v339 = vmul.f32 %v250, %v250
    %v340 = vmul.f32 %v291, %v291
    %v341 = vmul.f32 %v212, %v212
    %v342 = vmul.f32 %v253, %v253
    %v343 = vmul.f32 %v294, %v294
    %v344 = vmul.f32 %v215, %v215
    %v345 = vmul.f32 %v256, %v256
    %v346 = vmul.f32 %v297, %v297
    %v347 = vmul.f32 %v218, %v218
    %v348 = vmul.f32 %v259, %v259
    %v349 = vmul.f32 %v300, %v300
    %v350 = vmul.f32 %v221, %v221
    %v351 = vmul.f32 %v262, %v262
    %v352 = vmul.f32 %v303, %v303
    %v353 = vmul.f32 %v224, %v224
    %v354 = vmul.f32 %v265, %v265
    %v355 = vmul.f32 %v306, %v306
    %v356 = vmul.f32 %v227, %v227
    %v357 = vmul.f32 %v268, %v268
    %v358 = vmul.f32 %v309, %v309
    %v359 = vadd.f32 %v311, %v335
    %v360 = vadd.f32 %v312, %v336
    %v361 = vadd.f32 %v313, %v337
    %v362 = vadd.f32 %v314, %v338
    %v363 = vadd.f32 %v315, %v339
    %v364 = vadd.f32 %v316, %v340
    %v365 = vadd.f32 %v317, %v341
    %v366 = vadd.f32 %v318, %v342
    %v367 = vadd.f32 %v319, %v343
    %v368 = vadd.f32 %v320, %v344
    %v369 = vadd.f32 %v321, %v345
    %v370 = vadd.f32 %v322, %v346
    %v371 = vadd.f32 %v323, %v347
    %v372 = vadd.f32 %v324, %v348
    %v373 = vadd.f32 %v325, %v349
    %v374 = vadd.f32 %v326, %v350
    %v375 = vadd.f32 %v327, %v351
    %v376 = vadd.f32 %v328, %v352
    %v377 = vadd.f32 %v329, %v353
    %v378 = vadd.f32 %v330, %v354
    %v379 = vadd.f32 %v331, %v355
    %v380 = vadd.f32 %v332, %v356
    %v381 = vadd.f32 %v333, %v357
    %v382 = vadd.f32 %v334, %v358
    %v383 = vld [vmem:[#allocation2 + $0x30] sm:$0xff]
    %v384 = vld [vmem:[#allocation2 + $0x38] sm:$0xff]
    %v385 = vld [vmem:[#allocation2 + $0x40] sm:$0xff]
    %v386 = vld [vmem:[#allocation2 + $0x48] sm:$0xff]
    %v387 = vld [vmem:[#allocation2 + $0x50] sm:$0xff]
    %v388 = vld [vmem:[#allocation2 + $0x58] sm:$0xff]
    %389 = vmatpush.msra.mxu0 0.0
    %390 = vmatpush.msra.mxu0 0.0
    %391 = vmatpush.msra.mxu0 0.0
    %392 = vmatpush.msra.mxu0 0.0
    %393 = vmatpush.msra.mxu0 0.0
    %394 = vmatpush.msra.mxu0 0.0
    %395 = vmatpush.msra.mxu0 0.0
    %396 = vmatpush.msra.mxu0 0.0
    %397 = vmatpush.msra.mxu0 0.0
    %398 = vmatpush.msra.mxu0 0.0
    %399 = vmatpush.msra.mxu0 0.0
    %400 = vmatpush.msra.mxu0 0.0
    %401 = vmatpush.msra.mxu0 0.0
    %402 = vmatpush.msra.mxu0 0.0
    %403 = vmatpush.msra.mxu0 0.0
    %404 = vmatpush.msra.mxu0 %v383
    %405 = vmatmul.f32.gmra.mxu0 %v42
    %v406 = vpop.f32.mrf.mxu0
    %v407 = vadd.f32 0.0, %v406
    %408 = vmatmul.f32.gmra.mxu0 %v45
    %v409 = vpop.f32.mrf.mxu0
    %v410 = vadd.f32 0.0, %v409
    %411 = vmatmul.f32.gmra.mxu0 %v48
    %v412 = vpop.f32.mrf.mxu0
    %v413 = vadd.f32 0.0, %v412
    %414 = vmatmul.f32.gmra.mxu0 %v51
    %v415 = vpop.f32.mrf.mxu0
    %v416 = vadd.f32 0.0, %v415
    %417 = vmatmul.f32.gmra.mxu0 %v54
    %v418 = vpop.f32.mrf.mxu0
    %v419 = vadd.f32 0.0, %v418
    %420 = vmatmul.f32.gmra.mxu0 %v57
    %v421 = vpop.f32.mrf.mxu0
    %v422 = vadd.f32 0.0, %v421
    %423 = vmatmul.f32.gmra.mxu0 %v60
    %v424 = vpop.f32.mrf.mxu0
    %v425 = vadd.f32 0.0, %v424
    %426 = vmatmul.f32.gmra.mxu0 %v63
    %v427 = vpop.f32.mrf.mxu0
    %v428 = vadd.f32 0.0, %v427
    %429 = vdwg.mxu0
    %430 = vmatpush.msra.mxu0 0.0
    %431 = vmatpush.msra.mxu0 0.0
    %432 = vmatpush.msra.mxu0 0.0
    %433 = vmatpush.msra.mxu0 0.0
    %434 = vmatpush.msra.mxu0 0.0
    %435 = vmatpush.msra.mxu0 0.0
    %436 = vmatpush.msra.mxu0 0.0
    %437 = vmatpush.msra.mxu0 0.0
    %438 = vmatpush.msra.mxu0 0.0
    %439 = vmatpush.msra.mxu0 0.0
    %440 = vmatpush.msra.mxu0 0.0
    %441 = vmatpush.msra.mxu0 0.0
    %442 = vmatpush.msra.mxu0 0.0
    %443 = vmatpush.msra.mxu0 0.0
    %444 = vmatpush.msra.mxu0 0.0
    %445 = vmatpush.msra.mxu0 %v384
    %446 = vmatmul.f32.gmra.mxu0 %v42
    %v447 = vpop.f32.mrf.mxu0
    %v448 = vadd.f32 0.0, %v447
    %449 = vmatmul.f32.gmra.mxu0 %v45
    %v450 = vpop.f32.mrf.mxu0
    %v451 = vadd.f32 0.0, %v450
    %452 = vmatmul.f32.gmra.mxu0 %v48
    %v453 = vpop.f32.mrf.mxu0
    %v454 = vadd.f32 0.0, %v453
    %455 = vmatmul.f32.gmra.mxu0 %v51
    %v456 = vpop.f32.mrf.mxu0
    %v457 = vadd.f32 0.0, %v456
    %458 = vmatmul.f32.gmra.mxu0 %v54
    %v459 = vpop.f32.mrf.mxu0
    %v460 = vadd.f32 0.0, %v459
    %461 = vmatmul.f32.gmra.mxu0 %v57
    %v462 = vpop.f32.mrf.mxu0
    %v463 = vadd.f32 0.0, %v462
    %464 = vmatmul.f32.gmra.mxu0 %v60
    %v465 = vpop.f32.mrf.mxu0
    %v466 = vadd.f32 0.0, %v465
    %467 = vmatmul.f32.gmra.mxu0 %v63
    %v468 = vpop.f32.mrf.mxu0
    %v469 = vadd.f32 0.0, %v468
    %470 = vdwg.mxu0
    %471 = vmatpush.msra.mxu0 0.0
    %472 = vmatpush.msra.mxu0 0.0
    %473 = vmatpush.msra.mxu0 0.0
    %474 = vmatpush.msra.mxu0 0.0
    %475 = vmatpush.msra.mxu0 0.0
    %476 = vmatpush.msra.mxu0 0.0
    %477 = vmatpush.msra.mxu0 0.0
    %478 = vmatpush.msra.mxu0 0.0
    %479 = vmatpush.msra.mxu0 0.0
    %480 = vmatpush.msra.mxu0 0.0
    %481 = vmatpush.msra.mxu0 0.0
    %482 = vmatpush.msra.mxu0 0.0
    %483 = vmatpush.msra.mxu0 0.0
    %484 = vmatpush.msra.mxu0 0.0
    %485 = vmatpush.msra.mxu0 0.0
    %486 = vmatpush.msra.mxu0 %v385
    %487 = vmatmul.f32.gmra.mxu0 %v42
    %v488 = vpop.f32.mrf.mxu0
    %v489 = vadd.f32 0.0, %v488
    %490 = vmatmul.f32.gmra.mxu0 %v45
    %v491 = vpop.f32.mrf.mxu0
    %v492 = vadd.f32 0.0, %v491
    %493 = vmatmul.f32.gmra.mxu0 %v48
    %v494 = vpop.f32.mrf.mxu0
    %v495 = vadd.f32 0.0, %v494
    %496 = vmatmul.f32.gmra.mxu0 %v51
    %v497 = vpop.f32.mrf.mxu0
    %v498 = vadd.f32 0.0, %v497
    %499 = vmatmul.f32.gmra.mxu0 %v54
    %v500 = vpop.f32.mrf.mxu0
    %v501 = vadd.f32 0.0, %v500
    %502 = vmatmul.f32.gmra.mxu0 %v57
    %v503 = vpop.f32.mrf.mxu0
    %v504 = vadd.f32 0.0, %v503
    %505 = vmatmul.f32.gmra.mxu0 %v60
    %v506 = vpop.f32.mrf.mxu0
    %v507 = vadd.f32 0.0, %v506
    %508 = vmatmul.f32.gmra.mxu0 %v63
    %v509 = vpop.f32.mrf.mxu0
    %v510 = vadd.f32 0.0, %v509
    %511 = vdwg.mxu0
    %512 = vmatpush.msra.mxu0 0.0
    %513 = vmatpush.msra.mxu0 0.0
    %514 = vmatpush.msra.mxu0 0.0
    %515 = vmatpush.msra.mxu0 0.0
    %516 = vmatpush.msra.mxu0 0.0
    %517 = vmatpush.msra.mxu0 0.0
    %518 = vmatpush.msra.mxu0 0.0
    %519 = vmatpush.msra.mxu0 0.0
    %520 = vmatpush.msra.mxu0 0.0
    %521 = vmatpush.msra.mxu0 0.0
    %522 = vmatpush.msra.mxu0 0.0
    %523 = vmatpush.msra.mxu0 0.0
    %524 = vmatpush.msra.mxu0 0.0
    %525 = vmatpush.msra.mxu0 0.0
    %526 = vmatpush.msra.mxu0 0.0
    %527 = vmatpush.msra.mxu0 %v386
    %528 = vmatmul.f32.gmra.mxu0 %v42
    %v529 = vpop.f32.mrf.mxu0
    %v530 = vadd.f32 0.0, %v529
    %531 = vmatmul.f32.gmra.mxu0 %v45
    %v532 = vpop.f32.mrf.mxu0
    %v533 = vadd.f32 0.0, %v532
    %534 = vmatmul.f32.gmra.mxu0 %v48
    %v535 = vpop.f32.mrf.mxu0
    %v536 = vadd.f32 0.0, %v535
    %537 = vmatmul.f32.gmra.mxu0 %v51
    %v538 = vpop.f32.mrf.mxu0
    %v539 = vadd.f32 0.0, %v538
    %540 = vmatmul.f32.gmra.mxu0 %v54
    %v541 = vpop.f32.mrf.mxu0
    %v542 = vadd.f32 0.0, %v541
    %543 = vmatmul.f32.gmra.mxu0 %v57
    %v544 = vpop.f32.mrf.mxu0
    %v545 = vadd.f32 0.0, %v544
    %546 = vmatmul.f32.gmra.mxu0 %v60
    %v547 = vpop.f32.mrf.mxu0
    %v548 = vadd.f32 0.0, %v547
    %549 = vmatmul.f32.gmra.mxu0 %v63
    %v550 = vpop.f32.mrf.mxu0
    %v551 = vadd.f32 0.0, %v550
    %552 = vdwg.mxu0
    %553 = vmatpush.msra.mxu0 0.0
    %554 = vmatpush.msra.mxu0 0.0
    %555 = vmatpush.msra.mxu0 0.0
    %556 = vmatpush.msra.mxu0 0.0
    %557 = vmatpush.msra.mxu0 0.0
    %558 = vmatpush.msra.mxu0 0.0
    %559 = vmatpush.msra.mxu0 0.0
    %560 = vmatpush.msra.mxu0 0.0
    %561 = vmatpush.msra.mxu0 0.0
    %562 = vmatpush.msra.mxu0 0.0
    %563 = vmatpush.msra.mxu0 0.0
    %564 = vmatpush.msra.mxu0 0.0
    %565 = vmatpush.msra.mxu0 0.0
    %566 = vmatpush.msra.mxu0 0.0
    %567 = vmatpush.msra.mxu0 0.0
    %568 = vmatpush.msra.mxu0 %v387
    %569 = vmatmul.f32.gmra.mxu0 %v42
    %v570 = vpop.f32.mrf.mxu0
    %v571 = vadd.f32 0.0, %v570
    %572 = vmatmul.f32.gmra.mxu0 %v45
    %v573 = vpop.f32.mrf.mxu0
    %v574 = vadd.f32 0.0, %v573
    %575 = vmatmul.f32.gmra.mxu0 %v48
    %v576 = vpop.f32.mrf.mxu0
    %v577 = vadd.f32 0.0, %v576
    %578 = vmatmul.f32.gmra.mxu0 %v51
    %v579 = vpop.f32.mrf.mxu0
    %v580 = vadd.f32 0.0, %v579
    %581 = vmatmul.f32.gmra.mxu0 %v54
    %v582 = vpop.f32.mrf.mxu0
    %v583 = vadd.f32 0.0, %v582
    %584 = vmatmul.f32.gmra.mxu0 %v57
    %v585 = vpop.f32.mrf.mxu0
    %v586 = vadd.f32 0.0, %v585
    %587 = vmatmul.f32.gmra.mxu0 %v60
    %v588 = vpop.f32.mrf.mxu0
    %v589 = vadd.f32 0.0, %v588
    %590 = vmatmul.f32.gmra.mxu0 %v63
    %v591 = vpop.f32.mrf.mxu0
    %v592 = vadd.f32 0.0, %v591
    %593 = vdwg.mxu0
    %594 = vmatpush.msra.mxu0 0.0
    %595 = vmatpush.msra.mxu0 0.0
    %596 = vmatpush.msra.mxu0 0.0
    %597 = vmatpush.msra.mxu0 0.0
    %598 = vmatpush.msra.mxu0 0.0
    %599 = vmatpush.msra.mxu0 0.0
    %600 = vmatpush.msra.mxu0 0.0
    %601 = vmatpush.msra.mxu0 0.0
    %602 = vmatpush.msra.mxu0 0.0
    %603 = vmatpush.msra.mxu0 0.0
    %604 = vmatpush.msra.mxu0 0.0
    %605 = vmatpush.msra.mxu0 0.0
    %606 = vmatpush.msra.mxu0 0.0
    %607 = vmatpush.msra.mxu0 0.0
    %608 = vmatpush.msra.mxu0 0.0
    %609 = vmatpush.msra.mxu0 %v388
    %610 = vmatmul.f32.gmra.mxu0 %v42
    %v611 = vpop.f32.mrf.mxu0
    %v612 = vadd.f32 0.0, %v611
    %613 = vmatmul.f32.gmra.mxu0 %v45
    %v614 = vpop.f32.mrf.mxu0
    %v615 = vadd.f32 0.0, %v614
    %616 = vmatmul.f32.gmra.mxu0 %v48
    %v617 = vpop.f32.mrf.mxu0
    %v618 = vadd.f32 0.0, %v617
    %619 = vmatmul.f32.gmra.mxu0 %v51
    %v620 = vpop.f32.mrf.mxu0
    %v621 = vadd.f32 0.0, %v620
    %622 = vmatmul.f32.gmra.mxu0 %v54
    %v623 = vpop.f32.mrf.mxu0
    %v624 = vadd.f32 0.0, %v623
    %625 = vmatmul.f32.gmra.mxu0 %v57
    %v626 = vpop.f32.mrf.mxu0
    %v627 = vadd.f32 0.0, %v626
    %628 = vmatmul.f32.gmra.mxu0 %v60
    %v629 = vpop.f32.mrf.mxu0
    %v630 = vadd.f32 0.0, %v629
    %631 = vmatmul.f32.gmra.mxu0 %v63
    %v632 = vpop.f32.mrf.mxu0
    %v633 = vadd.f32 0.0, %v632
    %634 = vdwg.mxu0
    %v635 = vmul.f32 %v407, %v407
    %v636 = vmul.f32 %v448, %v448
    %v637 = vmul.f32 %v489, %v489
    %v638 = vmul.f32 %v410, %v410
    %v639 = vmul.f32 %v451, %v451
    %v640 = vmul.f32 %v492, %v492
    %v641 = vmul.f32 %v413, %v413
    %v642 = vmul.f32 %v454, %v454
    %v643 = vmul.f32 %v495, %v495
    %v644 = vmul.f32 %v416, %v416
    %v645 = vmul.f32 %v457, %v457
    %v646 = vmul.f32 %v498, %v498
    %v647 = vmul.f32 %v419, %v419
    %v648 = vmul.f32 %v460, %v460
    %v649 = vmul.f32 %v501, %v501
    %v650 = vmul.f32 %v422, %v422
    %v651 = vmul.f32 %v463, %v463
    %v652 = vmul.f32 %v504, %v504
    %v653 = vmul.f32 %v425, %v425
    %v654 = vmul.f32 %v466, %v466
    %v655 = vmul.f32 %v507, %v507
    %v656 = vmul.f32 %v428, %v428
    %v657 = vmul.f32 %v469, %v469
    %v658 = vmul.f32 %v510, %v510
    %v659 = vmul.f32 %v530, %v530
    %v660 = vmul.f32 %v571, %v571
    %v661 = vmul.f32 %v612, %v612
    %v662 = vmul.f32 %v533, %v533
    %v663 = vmul.f32 %v574, %v574
    %v664 = vmul.f32 %v615, %v615
    %v665 = vmul.f32 %v536, %v536
    %v666 = vmul.f32 %v577, %v577
    %v667 = vmul.f32 %v618, %v618
    %v668 = vmul.f32 %v539, %v539
    %v669 = vmul.f32 %v580, %v580
    %v670 = vmul.f32 %v621, %v621
    %v671 = vmul.f32 %v542, %v542
    %v672 = vmul.f32 %v583, %v583
    %v673 = vmul.f32 %v624, %v624
    %v674 = vmul.f32 %v545, %v545
    %v675 = vmul.f32 %v586, %v586
    %v676 = vmul.f32 %v627, %v627
    %v677 = vmul.f32 %v548, %v548
    %v678 = vmul.f32 %v589, %v589
    %v679 = vmul.f32 %v630, %v630
    %v680 = vmul.f32 %v551, %v551
    %v681 = vmul.f32 %v592, %v592
    %v682 = vmul.f32 %v633, %v633
    %v683 = vadd.f32 %v635, %v659
    %v684 = vadd.f32 %v636, %v660
    %v685 = vadd.f32 %v637, %v661
    %v686 = vadd.f32 %v638, %v662
    %v687 = vadd.f32 %v639, %v663
    %v688 = vadd.f32 %v640, %v664
    %v689 = vadd.f32 %v641, %v665
    %v690 = vadd.f32 %v642, %v666
    %v691 = vadd.f32 %v643, %v667
    %v692 = vadd.f32 %v644, %v668
    %v693 = vadd.f32 %v645, %v669
    %v694 = vadd.f32 %v646, %v670
    %v695 = vadd.f32 %v647, %v671
    %v696 = vadd.f32 %v648, %v672
    %v697 = vadd.f32 %v649, %v673
    %v698 = vadd.f32 %v650, %v674
    %v699 = vadd.f32 %v651, %v675
    %v700 = vadd.f32 %v652, %v676
    %v701 = vadd.f32 %v653, %v677
    %v702 = vadd.f32 %v654, %v678
    %v703 = vadd.f32 %v655, %v679
    %v704 = vadd.f32 %v656, %v680
    %v705 = vadd.f32 %v657, %v681
    %v706 = vadd.f32 %v658, %v682
    %v707 = vmul.f32 %v359, %v365
    %v708 = vmul.f32 %v360, %v366
    %v709 = vmul.f32 %v361, %v367
    %v710 = vmul.f32 %v362, %v368
    %v711 = vmul.f32 %v363, %v369
    %v712 = vmul.f32 %v364, %v370
    %v713 = vmul.f32 %v683, %v689
    %v714 = vmul.f32 %v684, %v690
    %v715 = vmul.f32 %v685, %v691
    %v716 = vmul.f32 %v686, %v692
    %v717 = vmul.f32 %v687, %v693
    %v718 = vmul.f32 %v688, %v694
    %v719 = vmul.f32 %v707, %v371
    %v720 = vmul.f32 %v708, %v372
    %v721 = vmul.f32 %v709, %v373
    %v722 = vmul.f32 %v710, %v374
    %v723 = vmul.f32 %v711, %v375
    %v724 = vmul.f32 %v712, %v376
    %v725 = vmul.f32 %v713, %v695
    %v726 = vmul.f32 %v714, %v696
    %v727 = vmul.f32 %v715, %v697
    %v728 = vmul.f32 %v716, %v698
    %v729 = vmul.f32 %v717, %v699
    %v730 = vmul.f32 %v718, %v700
    %v731 = vmul.f32 %v719, %v377
    %v732 = vmul.f32 %v720, %v378
    %v733 = vmul.f32 %v721, %v379
    %v734 = vmul.f32 %v722, %v380
    %v735 = vmul.f32 %v723, %v381
    %v736 = vmul.f32 %v724, %v382
    %v737 = vmul.f32 %v725, %v701
    %v738 = vmul.f32 %v726, %v702
    %v739 = vmul.f32 %v727, %v703
    %v740 = vmul.f32 %v728, %v704
    %v741 = vmul.f32 %v729, %v705
    %v742 = vmul.f32 %v730, %v706
    %v743 = vrcp.pop %v737
    %v744 = vmul.f32 %v737, %v743
    %v745 = vsub.f32 1.0, %v744
    %v746 = vmul.f32 %v743, %v745
    %v747 = vadd.f32 %v743, %v746
    %vm748 = vweird.f32 %v737
    %vm749 = vweird.f32 %v743
    %vm750 = vmor %vm748, %vm749
    %v751 = vsel %vm750, %v743, %v747
    %v752 = vand.u32 2147483647, %v737
    %vm753 = vcmp.eq.f32.partialorder %v752, 8.507059e+37
    %v754 = vand.u32 %v737, 2147483648
    %v755 = vor.u32 1.1754944e-38, %v754
    %v756 = vsel %vm753, %v755, %v751
    %v757 = vmul.f32 %v731, %v756
    %v758 = vrcp.pop %v738
    %v759 = vmul.f32 %v738, %v758
    %v760 = vsub.f32 1.0, %v759
    %v761 = vmul.f32 %v758, %v760
    %v762 = vadd.f32 %v758, %v761
    %vm763 = vweird.f32 %v738
    %vm764 = vweird.f32 %v758
    %vm765 = vmor %vm763, %vm764
    %v766 = vsel %vm765, %v758, %v762
    %v767 = vand.u32 2147483647, %v738
    %vm768 = vcmp.eq.f32.partialorder %v767, 8.507059e+37
    %v769 = vand.u32 %v738, 2147483648
    %v770 = vor.u32 1.1754944e-38, %v769
    %v771 = vsel %vm768, %v770, %v766
    %v772 = vmul.f32 %v732, %v771
    %v773 = vrcp.pop %v739
    %v774 = vmul.f32 %v739, %v773
    %v775 = vsub.f32 1.0, %v774
    %v776 = vmul.f32 %v773, %v775
    %v777 = vadd.f32 %v773, %v776
    %vm778 = vweird.f32 %v739
    %vm779 = vweird.f32 %v773
    %vm780 = vmor %vm778, %vm779
    %v781 = vsel %vm780, %v773, %v777
    %v782 = vand.u32 2147483647, %v739
    %vm783 = vcmp.eq.f32.partialorder %v782, 8.507059e+37
    %v784 = vand.u32 %v739, 2147483648
    %v785 = vor.u32 1.1754944e-38, %v784
    %v786 = vsel %vm783, %v785, %v781
    %v787 = vmul.f32 %v733, %v786
    %v788 = vrcp.pop %v740
    %v789 = vmul.f32 %v740, %v788
    %v790 = vsub.f32 1.0, %v789
    %v791 = vmul.f32 %v788, %v790
    %v792 = vadd.f32 %v788, %v791
    %vm793 = vweird.f32 %v740
    %vm794 = vweird.f32 %v788
    %vm795 = vmor %vm793, %vm794
    %v796 = vsel %vm795, %v788, %v792
    %v797 = vand.u32 2147483647, %v740
    %vm798 = vcmp.eq.f32.partialorder %v797, 8.507059e+37
    %v799 = vand.u32 %v740, 2147483648
    %v800 = vor.u32 1.1754944e-38, %v799
    %v801 = vsel %vm798, %v800, %v796
    %v802 = vmul.f32 %v734, %v801
    %v803 = vrcp.pop %v741
    %v804 = vmul.f32 %v741, %v803
    %v805 = vsub.f32 1.0, %v804
    %v806 = vmul.f32 %v803, %v805
    %v807 = vadd.f32 %v803, %v806
    %vm808 = vweird.f32 %v741
    %vm809 = vweird.f32 %v803
    %vm810 = vmor %vm808, %vm809
    %v811 = vsel %vm810, %v803, %v807
    %v812 = vand.u32 2147483647, %v741
    %vm813 = vcmp.eq.f32.partialorder %v812, 8.507059e+37
    %v814 = vand.u32 %v741, 2147483648
    %v815 = vor.u32 1.1754944e-38, %v814
    %v816 = vsel %vm813, %v815, %v811
    %v817 = vmul.f32 %v735, %v816
    %v818 = vrcp.pop %v742
    %v819 = vmul.f32 %v742, %v818
    %v820 = vsub.f32 1.0, %v819
    %v821 = vmul.f32 %v818, %v820
    %v822 = vadd.f32 %v818, %v821
    %vm823 = vweird.f32 %v742
    %vm824 = vweird.f32 %v818
    %vm825 = vmor %vm823, %vm824
    %v826 = vsel %vm825, %v818, %v822
    %v827 = vand.u32 2147483647, %v742
    %vm828 = vcmp.eq.f32.partialorder %v827, 8.507059e+37
    %v829 = vand.u32 %v742, 2147483648
    %v830 = vor.u32 1.1754944e-38, %v829
    %v831 = vsel %vm828, %v830, %v826
    %v832 = vmul.f32 %v736, %v831
    %v833 = vrsqrt.pop %v757
    %v834 = vmul.f32 %v833, %v757
    %v835 = vmul.f32 %v834, %v833
    %v836 = vmul.f32 0.5, %v835
    %v837 = vsub.f32 1.5, %v836
    %v838 = vmul.f32 %v833, %v837
    %v839 = vmul.f32 %v757, %v838
    %vm840 = vcmp.eq.f32.partialorder %v757, inf
    %v841 = vsel %vm840, %v757, %v839
    %vm842 = vcmp.eq.f32.partialorder %v757, 0.0
    %v843 = vand.u32 %v757, 2147483648
    %v844 = vsel %vm842, %v843, %v841
    %v845 = vrsqrt.pop %v772
    %v846 = vmul.f32 %v845, %v772
    %v847 = vmul.f32 %v846, %v845
    %v848 = vmul.f32 0.5, %v847
    %v849 = vsub.f32 1.5, %v848
    %v850 = vmul.f32 %v845, %v849
    %v851 = vmul.f32 %v772, %v850
    %vm852 = vcmp.eq.f32.partialorder %v772, inf
    %v853 = vsel %vm852, %v772, %v851
    %vm854 = vcmp.eq.f32.partialorder %v772, 0.0
    %v855 = vand.u32 %v772, 2147483648
    %v856 = vsel %vm854, %v855, %v853
    %v857 = vrsqrt.pop %v787
    %v858 = vmul.f32 %v857, %v787
    %v859 = vmul.f32 %v858, %v857
    %v860 = vmul.f32 0.5, %v859
    %v861 = vsub.f32 1.5, %v860
    %v862 = vmul.f32 %v857, %v861
    %v863 = vmul.f32 %v787, %v862
    %vm864 = vcmp.eq.f32.partialorder %v787, inf
    %v865 = vsel %vm864, %v787, %v863
    %vm866 = vcmp.eq.f32.partialorder %v787, 0.0
    %v867 = vand.u32 %v787, 2147483648
    %v868 = vsel %vm866, %v867, %v865
    %v869 = vrsqrt.pop %v802
    %v870 = vmul.f32 %v869, %v802
    %v871 = vmul.f32 %v870, %v869
    %v872 = vmul.f32 0.5, %v871
    %v873 = vsub.f32 1.5, %v872
    %v874 = vmul.f32 %v869, %v873
    %v875 = vmul.f32 %v802, %v874
    %vm876 = vcmp.eq.f32.partialorder %v802, inf
    %v877 = vsel %vm876, %v802, %v875
    %vm878 = vcmp.eq.f32.partialorder %v802, 0.0
    %v879 = vand.u32 %v802, 2147483648
    %v880 = vsel %vm878, %v879, %v877
    %v881 = vrsqrt.pop %v817
    %v882 = vmul.f32 %v881, %v817
    %v883 = vmul.f32 %v882, %v881
    %v884 = vmul.f32 0.5, %v883
    %v885 = vsub.f32 1.5, %v884
    %v886 = vmul.f32 %v881, %v885
    %v887 = vmul.f32 %v817, %v886
    %vm888 = vcmp.eq.f32.partialorder %v817, inf
    %v889 = vsel %vm888, %v817, %v887
    %vm890 = vcmp.eq.f32.partialorder %v817, 0.0
    %v891 = vand.u32 %v817, 2147483648
    %v892 = vsel %vm890, %v891, %v889
    %v893 = vrsqrt.pop %v832
    %v894 = vmul.f32 %v893, %v832
    %v895 = vmul.f32 %v894, %v893
    %v896 = vmul.f32 0.5, %v895
    %v897 = vsub.f32 1.5, %v896
    %v898 = vmul.f32 %v893, %v897
    %v899 = vmul.f32 %v832, %v898
    %vm900 = vcmp.eq.f32.partialorder %v832, inf
    %v901 = vsel %vm900, %v832, %v899
    %vm902 = vcmp.eq.f32.partialorder %v832, 0.0
    %v903 = vand.u32 %v832, 2147483648
    %v904 = vsel %vm902, %v903, %v901
    %v905 = vadd.f32 %v844, 1e-08
    %v906 = vadd.f32 %v856, 1e-08
    %v907 = vadd.f32 %v868, 1e-08
    %v908 = vadd.f32 %v880, 1e-08
    %v909 = vadd.f32 %v892, 1e-08
    %v910 = vadd.f32 %v904, 1e-08
    %v911 = vlog2.pop %v905
    %v912 = vmul.f32 %v911, 0.6931472
    %v913 = vlog2.pop %v906
    %v914 = vmul.f32 %v913, 0.6931472
    %v915 = vlog2.pop %v907
    %v916 = vmul.f32 %v915, 0.6931472
    %v917 = vlog2.pop %v908
    %v918 = vmul.f32 %v917, 0.6931472
    %v919 = vlog2.pop %v909
    %v920 = vmul.f32 %v919, 0.6931472
    %v921 = vlog2.pop %v910
    %v922 = vmul.f32 %v921, 0.6931472
    %v923 = vmul.f32 %v912, 8.685889
    %v924 = vmul.f32 %v914, 8.685889
    %v925 = vmul.f32 %v916, 8.685889
    %v926 = vmul.f32 %v918, 8.685889
    %v927 = vmul.f32 %v920, 8.685889
    %v928 = vmul.f32 %v922, 8.685889
    %v929 = vsub.f32 %v923, %v926
    %v930 = vsub.f32 %v924, %v927
    %v931 = vsub.f32 %v925, %v928
    %v932 = vlaneseq
    %v933 = vand.u32 %v932, 127
    %v934 = vadd.s32 %v933, 128
    %v935 = vadd.s32 %v933, 256
    %vm936 = vcmp.lt.s32.totalorder %v933, 257
    %vm937 = vcmp.lt.s32.totalorder %v934, 257
    %vm938 = vcmp.lt.s32.totalorder %v935, 257
    %v939 = vsel %vm936, %v929, 0.0
    %v940 = vsel %vm937, %v930, 0.0
    %v941 = vsel %vm938, %v931, 0.0
    %v942 = vmul.f32 %v939, %v939
    %v943 = vmul.f32 %v940, %v940
    %v944 = vmul.f32 %v941, %v941
    %v945 = vadd.f32 %v942, %v943
    %v946 = vadd.f32 %v945, %v944
    %947 = vadd.xlane.f32.xlu0 %v946
    %v948 = vpop.xlane.xlu0 %947
    %v949 = vrot.slane %v948, 4
    %v950 = vadd.f32 %v948, %v949
    %v951 = vrot.slane %v950, 2
    %v952 = vadd.f32 %v950, %v951
    %v953 = vrot.slane %v952, 1
    %v954 = vadd.f32 %v952, %v953
    %s955 = vtos %v954
    %v956 = vlaneseq
    %v957 = vshrl.u32 %v956, 7
    %vm958 = vcmp.eq.s32.totalorder %v957, 0
    %vm959 = vcmp.eq.s32.totalorder %v933, 0
    %vm960 = vmand %vm958, %vm959
    %v961 = vstv %s955
    %v962 = vsel %vm960, %v961, 0.0
    %963 = vst [vmem:[#allocation5] sm:$0xff] %v962
    // Predicated region
    $region14: #{tpu_custom_call.1} parent=1 // pred_check
      _
    $region15: #{tpu_custom_call.1} parent=1 // pred_check_branch
      %965 = sbr.rel (0) target = $region17
    $region16: #{tpu_custom_call.1} parent=1 // pred_region
      %967 = vsyncadd [#allocation4], 0
      %s969 = sshll.u32 [#allocation5], 4
      %s970 = int_to_ptr.vmem [resolvable:$true] %s969
      %s971 = sshll.u32 %s2, 4
      %s972 = int_to_ptr.hbm [resolvable:$true] %s971
      %974 = dma.vmem_to_hbm [thread:$0]  %s970, 128, %s972, [#allocation4]
    $region17: #{tpu_custom_call.1} parent=1 // pred_fallthru
      _
    // Predicated region
    $region18: #{tpu_custom_call.1} parent=1 // pred_check
      _
    $region19: #{tpu_custom_call.1} parent=1 // pred_check_branch
      %976 = sbr.rel (0) target = $region21
    $region20: #{tpu_custom_call.1} parent=1 // pred_region
      %978 = dma.done [#allocation4], 128
    $region21: #{tpu_custom_call.1} parent=1 // pred_fallthru
      _
    %979 = vsyncpa [#allocation3], 1
    %980 = vsyncpa [#allocation4], 1

</llo_original>
